<compile_context>
chip_gen: v7x
topology: tpu7x:2x2x1
jax: 0.10.0
libtpu: 0.0.40
codegen_flags: <defaults>
</compile_context>

<pallas_src>
import functools

import jax
import jax.numpy as jnp
from jax.experimental import pallas as pl
from jax.experimental.pallas import tpu as pltpu

_MiB = 1024 * 1024


def _round_up(x, m):
    return ((x + m - 1) // m) * m


def _tpu_vmem_capacity_bytes():
    """Physical VMEM per TensorCore; conservative fallback = 64 MiB (v7x)."""
    try:
        cap = int(pltpu.get_tpu_info().vmem_capacity_bytes)
        if cap > 0:
            return cap
    except Exception:
        pass
    return 64 * _MiB


def _tpu_num_tensorcores():
    """TensorCores per chip (2 on v7x); fallback = 1 (v5e/v6e)."""
    try:
        info = pltpu.get_tpu_info()
        for attr in ("num_cores", "core_count", "tensorcore_count", "num_tensorcores"):
            v = getattr(info, attr, None)
            if isinstance(v, int) and v > 0:
                return v
    except Exception:
        pass
    return 1


def learned_mixin_kernel(hidden_ref, logits_ref, bias_ref, labels_ref,
                         w_ref, b_ref, ce_ref, ent_ref, *, true_b):
    c = pl.program_id(0)              # batch-slab index ("parallel")
    i = pl.program_id(1)              # block index within the slab ("arbitrary")
    nb = pl.num_programs(1)

    # Per-slab accumulators live directly in the resident output blocks.
    @pl.when(i == 0)
    def _():
        ce_ref[...] = jnp.zeros_like(ce_ref)
        ent_ref[...] = jnp.zeros_like(ent_ref)

    TB, C = logits_ref.shape
    labels = labels_ref[...]                                     # (TB, 1) int32

    # Mask for zero-padded tail rows (B not a multiple of the tile).
    row0 = (c * nb + i) * TB
    rows = row0 + jax.lax.broadcasted_iota(jnp.int32, (TB, 1), 0)
    valid = rows < true_b                                        # (TB, 1) bool

    b = b_ref[0, 0]                                              # scalar (SMEM)

    # ---- factor = softplus(bias_lin(hidden)) : VPU multiply + XLU lane-reduce ----
    hidden = hidden_ref[...].astype(jnp.float32)                 # (TB, D)
    w_row = w_ref[...].astype(jnp.float32)                       # (1, D)
    lin = jnp.sum(hidden * w_row, axis=1, keepdims=True) + b     # (TB, 1)
    # Stable softplus; matches PyTorch's thresholded softplus to f32 precision.
    factor = jnp.maximum(lin, 0.0) + jnp.log1p(jnp.exp(-jnp.abs(lin)))

    bias_scaled = bias_ref[...].astype(jnp.float32) * factor     # (TB, C)

    # ---- entropy of softmax(bias_scaled) with a single exp pass ----
    #   H = log(sum e) - sum(e*u)/sum(e),   u = x - max(x),  e = exp(u)
    m_b = jnp.max(bias_scaled, axis=1, keepdims=True)
    u = bias_scaled - m_b
    e = jnp.exp(u)
    s = jnp.sum(e, axis=1, keepdims=True)
    ent_rows = (jnp.log(s)
                - jnp.sum(e * u, axis=1, keepdims=True) * pl.reciprocal(s, approx=True))

    # ---- cross entropy of (log_softmax(logits) + bias_scaled) at labels ----
    # By shift invariance of log_softmax, the inner log_softmax(logits) cancels:
    #   CE(log_softmax(logits) + bias, y) == CE(logits + bias, y),
    # so no per-row lse over the raw logits is needed.
    z = logits_ref[...].astype(jnp.float32) + bias_scaled        # (TB, C)
    m_z = jnp.max(z, axis=1, keepdims=True)
    lse_z = m_z + jnp.log(jnp.sum(jnp.exp(z - m_z), axis=1, keepdims=True))
    # TODO(synk): F.cross_entropy's ignore_index=-100 is not implemented; labels are
    # assumed to be valid class indices (as in the reference forward).
    one_hot = jax.lax.broadcasted_iota(jnp.int32, (TB, C), 1) == labels
    picked = jnp.sum(jnp.where(one_hot, z, 0.0), axis=1, keepdims=True)
    ce_rows = lse_z - picked                                     # (TB, 1)

    ce_blk = jnp.sum(jnp.where(valid, ce_rows, 0.0), axis=0, keepdims=True)    # (1,1)
    ent_blk = jnp.sum(jnp.where(valid, ent_rows, 0.0), axis=0, keepdims=True)  # (1,1)
    ce_ref[...] += ce_blk.reshape(1, 1, 1)
    ent_ref[...] += ent_blk.reshape(1, 1, 1)


def learned_mixin_loss(hidden, logits, bias, labels, w, b, penalty,
                       block_rows=1024, num_slabs=None, vmem_budget_bytes=None):
    B, D = hidden.shape
    C = logits.shape[1]

    # Generation-aware VMEM budgeting: ~60% of physical per-TC VMEM, capped at 40 MiB
    # (respects v7x's 64 MiB while exploiting the 128 MiB headroom on v5e/v6e).
    phys = _tpu_vmem_capacity_bytes()
    if vmem_budget_bytes is None:
        vmem_budget_bytes = int(min(40 * _MiB, (phys * 6) // 10))

    # Per-row VMEM: double-buffered input tiles + f32 compute temporaries
    # (hidden*w product, bias_scaled / e / z / where masks on the class axis).
    in_bytes_per_row = (D * hidden.dtype.itemsize
                        + C * (logits.dtype.itemsize + bias.dtype.itemsize) + 4)
    work_bytes_per_row = 4 * (2 * D + 5 * C)
    per_row = 2 * in_bytes_per_row + work_bytes_per_row
    fixed = 2 * (D * 4) + 4096                      # double-buffered (1, D) weight row + misc
    cap = max(8, ((max(vmem_budget_bytes - fixed, per_row * 8)) // per_row) // 8 * 8)
    TB = int(max(8, min(block_rows, cap, _round_up(B, 8))))

    nb_total = pl.cdiv(B, TB)
    NS = int(num_slabs) if num_slabs is not None else _tpu_num_tensorcores()
    NS = NS if nb_total >= NS else 1                # slabs (2 -> v7x 2-TC split)
    NB = pl.cdiv(nb_total, NS)
    B_pad = NS * NB * TB

    pad = B_pad - B
    if pad:
        hidden = jnp.pad(hidden, ((0, pad), (0, 0)))
        logits = jnp.pad(logits, ((0, pad), (0, 0)))
        bias = jnp.pad(bias, ((0, pad), (0, 0)))
        labels = jnp.pad(labels, ((0, pad),))
    labels2d = labels.reshape(B_pad, 1).astype(jnp.int32)

    w_row = w.reshape(1, D).astype(jnp.float32)      # lane-dense weight row (no zero padding)
    b2d = jnp.asarray(b, jnp.float32).reshape(1, 1)

    kernel = functools.partial(learned_mixin_kernel, true_b=B)

    bytes_accessed = int(hidden.size * hidden.dtype.itemsize
                         + logits.size * logits.dtype.itemsize
                         + bias.size * bias.dtype.itemsize
                         + labels2d.size * 4 + w_row.size * 4 + 4 + 2 * NS * 4)
    cost = pl.CostEstimate(flops=int(B_pad) * (2 * D + 12 * C),
                           transcendentals=int(B_pad) * (2 * C + 4),
                           bytes_accessed=bytes_accessed)

    # Raise the scoped VMEM limit when the budget needs it, staying under physical.
    vmem_limit = int(max(32 * _MiB, min(phys - 8 * _MiB, vmem_budget_bytes + 8 * _MiB)))

    ce_parts, ent_parts = pl.pallas_call(
        kernel,
        out_shape=(jax.ShapeDtypeStruct((NS, 1, 1), jnp.float32),
                   jax.ShapeDtypeStruct((NS, 1, 1), jnp.float32)),
        grid=(NS, NB),
        in_specs=[
            pl.BlockSpec((TB, D), lambda c, i: (c * NB + i, 0)),       # hidden
            pl.BlockSpec((TB, C), lambda c, i: (c * NB + i, 0)),       # logits
            pl.BlockSpec((TB, C), lambda c, i: (c * NB + i, 0)),       # bias
            pl.BlockSpec((TB, 1), lambda c, i: (c * NB + i, 0)),       # labels
            pl.BlockSpec((1, D), lambda c, i: (0, 0)),                 # w row (resident)
            pl.BlockSpec(memory_space=pltpu.MemorySpace.SMEM),         # b scalar
        ],
        out_specs=(
            pl.BlockSpec((1, 1, 1), lambda c, i: (c, 0, 0)),           # per-slab ce sum
            pl.BlockSpec((1, 1, 1), lambda c, i: (c, 0, 0)),           # per-slab entropy sum
        ),
        compiler_params=pltpu.CompilerParams(
            dimension_semantics=("parallel", "arbitrary"),
            vmem_limit_bytes=vmem_limit),
        cost_estimate=cost,
    )(hidden, logits, bias, labels2d, w_row, b2d)

    # Finalize: combine per-slab partial sums, normalize by the *true* batch size.
    return (jnp.sum(ce_parts) + jnp.float32(penalty) * jnp.sum(ent_parts)) / B


def _reference_loss(hidden, logits, bias, labels, w, b, penalty):
    """Pure-JAX reference mirroring the PyTorch forward."""
    logits = jax.nn.log_softmax(logits.astype(jnp.float32), axis=1)
    factor = jnp.dot(hidden, w.reshape(-1, 1),
                     precision=jax.lax.Precision.HIGHEST) + b
    factor = jax.nn.softplus(factor.astype(jnp.float32))
    bias = bias * factor
    bias_lp = jax.nn.log_softmax(bias, axis=1)
    entropy = -(jnp.exp(bias_lp) * bias_lp).sum(1).mean(0)
    z_ls = jax.nn.log_softmax(logits + bias, axis=1)
    ce = -jnp.take_along_axis(z_ls, labels[:, None], axis=1).mean()
    return ce + penalty * entropy


if __name__ == "__main__":
    def run_case(key, B, D, C, penalty, block_rows, num_slabs=None):
        k1, k2, k3, k4, k5, k6 = jax.random.split(key, 6)
        hidden = jax.random.normal(k1, (B, D), dtype=jnp.float32)
        logits = jax.random.normal(k2, (B, C), dtype=jnp.float32)
        bias = jax.random.normal(k3, (B, C), dtype=jnp.float32)
        labels = jax.random.randint(k4, (B,), 0, C, dtype=jnp.int32)
        bound = 1.0 / (D ** 0.5)
        w = jax.random.uniform(k5, (1, D), minval=-bound, maxval=bound, dtype=jnp.float32)
        b = jax.random.uniform(k6, (1,), minval=-bound, maxval=bound, dtype=jnp.float32)

        loss = learned_mixin_loss(hidden, logits, bias, labels, w, b, penalty,
                                  block_rows=block_rows, num_slabs=num_slabs)
        loss = jax.block_until_ready(loss)
        ref = _reference_loss(hidden, logits, bias, labels, w, b, penalty)
        assert jnp.allclose(loss, ref, rtol=1e-4, atol=1e-4), (B, D, C, loss, ref)

    k_small, k_big = jax.random.split(jax.random.PRNGKey(0))
    # Small case consistent with the module (single block, single slab).
    run_case(k_small, B=8, D=32, C=16, penalty=0.5, block_rows=1024)
    # Larger case exercising batch tiling, the 2-slab "parallel" split and tail masking.
    run_case(k_big, B=50, D=32, C=16, penalty=0.3, block_rows=16, num_slabs=2)

    print("KERNEL_OK")
</pallas_src>

<mosaic_0001>
module attributes {stable_mosaic.version = 11 : i64} {
  func.func @learned_mixin_kernel(%arg0: i32, %arg1: i32, %arg2: memref<8x32xf32, #tpu.memory_space<vmem>>, %arg3: memref<8x16xf32, #tpu.memory_space<vmem>>, %arg4: memref<8x16xf32, #tpu.memory_space<vmem>>, %arg5: memref<8x1xi32, #tpu.memory_space<vmem>>, %arg6: memref<1x32xf32, #tpu.memory_space<vmem>>, %arg7: memref<1x1xf32, #tpu.memory_space<smem>>, %arg8: memref<1x1x1xf32, #tpu.memory_space<vmem>>, %arg9: memref<1x1x1xf32, #tpu.memory_space<vmem>>) attributes {dimension_semantics = [#tpu.dimension_semantics<parallel>, #tpu.dimension_semantics<arbitrary>], iteration_bounds = array<i64: 1, 1>, scalar_prefetch = 0 : i64, scratch_operands = 0 : i64, tpu.core_type = #tpu.core_type<tc>, window_params = [{transform_indices = @transform_0, window_bounds = array<i64: 8, 32>}, {transform_indices = @transform_1, window_bounds = array<i64: 8, 16>}, {transform_indices = @transform_2, window_bounds = array<i64: 8, 16>}, {transform_indices = @transform_3, window_bounds = array<i64: 8, 1>}, {pipeline_mode = #tpu.pipeline_mode<synchronous>, transform_indices = @transform_4, window_bounds = array<i64: 1, 32>}, {transform_indices = @transform_5, window_bounds = array<i64: 1, 1>}, {transform_indices = @transform_6, window_bounds = array<i64: 1, 1, 1>}, {transform_indices = @transform_7, window_bounds = array<i64: 1, 1, 1>}]} {
    %c0_i32 = arith.constant 0 : i32
    %0 = arith.cmpi eq, %arg1, %c0_i32 : i32
    %1 = arith.extui %0 : i1 to i32
    %c0_i32_0 = arith.constant 0 : i32
    %2 = arith.cmpi ne, %1, %c0_i32_0 : i32
    scf.if %2 {
      %cst_38 = arith.constant 0.000000e+00 : f32
      %81 = vector.broadcast %cst_38 : f32 to vector<1x1x1xf32>
      %c0_39 = arith.constant 0 : index
      %c0_40 = arith.constant 0 : index
      %c0_41 = arith.constant 0 : index
      %82 = vector.load %arg8[%c0_39, %c0_40, %c0_41] : memref<1x1x1xf32, #tpu.memory_space<vmem>>, vector<1x1x1xf32>
      tpu.vector_store %arg8[%c0_39, %c0_40, %c0_41], %81 {strides = array<i32>} : memref<1x1x1xf32, #tpu.memory_space<vmem>>, vector<1x1x1xf32>,
      %cst_42 = arith.constant 0.000000e+00 : f32
      %83 = vector.broadcast %cst_42 : f32 to vector<1x1x1xf32>
      %c0_43 = arith.constant 0 : index
      %c0_44 = arith.constant 0 : index
      %c0_45 = arith.constant 0 : index
      %84 = vector.load %arg9[%c0_43, %c0_44, %c0_45] : memref<1x1x1xf32, #tpu.memory_space<vmem>>, vector<1x1x1xf32>
      tpu.vector_store %arg9[%c0_43, %c0_44, %c0_45], %83 {strides = array<i32>} : memref<1x1x1xf32, #tpu.memory_space<vmem>>, vector<1x1x1xf32>,
    } else {
    }
    %c0 = arith.constant 0 : index
    %c0_1 = arith.constant 0 : index
    %3 = vector.load %arg5[%c0, %c0_1] : memref<8x1xi32, #tpu.memory_space<vmem>>, vector<8x1xi32>
    %c1_i32 = arith.constant 1 : i32
    %4 = arith.muli %arg0, %c1_i32 : i32
    %5 = arith.addi %4, %arg1 : i32
    %c8_i32 = arith.constant 8 : i32
    %6 = arith.muli %5, %c8_i32 : i32
    %7 = tpu.iota {dimensions = array<i32: 0>} : vector<8x1xi32>
    %8 = vector.broadcast %6 : i32 to vector<8x1xi32>
    %9 = arith.addi %8, %7 : vector<8x1xi32>
    %c8_i32_2 = arith.constant 8 : i32
    %10 = vector.broadcast %c8_i32_2 : i32 to vector<8x1xi32>
    %11 = arith.cmpi slt, %9, %10 : vector<8x1xi32>
    %c0_3 = arith.constant 0 : index
    %c0_4 = arith.constant 0 : index
    %12 = memref.load %arg7[%c0_3, %c0_4] : memref<1x1xf32, #tpu.memory_space<smem>>
    %c0_5 = arith.constant 0 : index
    %c0_6 = arith.constant 0 : index
    %13 = vector.load %arg2[%c0_5, %c0_6] : memref<8x32xf32, #tpu.memory_space<vmem>>, vector<8x32xf32>
    %c0_7 = arith.constant 0 : index
    %c0_8 = arith.constant 0 : index
    %14 = vector.load %arg6[%c0_7, %c0_8] : memref<1x32xf32, #tpu.memory_space<vmem>>, vector<1x32xf32>
    %15 = vector.broadcast %14 : vector<1x32xf32> to vector<8x32xf32>
    %16 = arith.mulf %13, %15 : vector<8x32xf32>
    %cst = arith.constant dense<0.000000e+00> : vector<8xf32>
    %17 = vector.multi_reduction <add>, %16, %cst [1] : vector<8x32xf32> to vector<8xf32>
    %18 = vector.shape_cast %17 : vector<8xf32> to vector<8x1xf32>
    %19 = vector.broadcast %12 : f32 to vector<8x1xf32>
    %20 = arith.addf %18, %19 : vector<8x1xf32>
    %cst_9 = arith.constant 0.000000e+00 : f32
    %21 = vector.broadcast %cst_9 : f32 to vector<8x1xf32>
    %22 = arith.maximumf %20, %21 : vector<8x1xf32>
    %23 = math.absf %20 : vector<8x1xf32>
    %cst_10 = arith.constant 0.000000e+00 : f32
    %24 = vector.broadcast %cst_10 : f32 to vector<8x1xf32>
    %25 = arith.subf %24, %23 : vector<8x1xf32>
    %26 = math.exp %25 : vector<8x1xf32>
    %27 = math.log1p %26 : vector<8x1xf32>
    %28 = arith.addf %22, %27 : vector<8x1xf32>
    %c0_11 = arith.constant 0 : index
    %c0_12 = arith.constant 0 : index
    %29 = vector.load %arg4[%c0_11, %c0_12] : memref<8x16xf32, #tpu.memory_space<vmem>>, vector<8x16xf32>
    %30 = vector.broadcast %28 : vector<8x1xf32> to vector<8x16xf32>
    %31 = arith.mulf %29, %30 : vector<8x16xf32>
    %cst_13 = arith.constant dense<0xFF800000> : vector<8xf32>
    %32 = vector.multi_reduction <maximumf>, %31, %cst_13 [1] : vector<8x16xf32> to vector<8xf32>
    %33 = vector.shape_cast %32 : vector<8xf32> to vector<8x1xf32>
    %34 = vector.broadcast %33 : vector<8x1xf32> to vector<8x16xf32>
    %35 = arith.subf %31, %34 : vector<8x16xf32>
    %36 = math.exp %35 : vector<8x16xf32>
    %cst_14 = arith.constant dense<0.000000e+00> : vector<8xf32>
    %37 = vector.multi_reduction <add>, %36, %cst_14 [1] : vector<8x16xf32> to vector<8xf32>
    %38 = vector.shape_cast %37 : vector<8xf32> to vector<8x1xf32>
    %39 = math.log %38 : vector<8x1xf32>
    %40 = arith.mulf %36, %35 : vector<8x16xf32>
    %cst_15 = arith.constant dense<0.000000e+00> : vector<8xf32>
    %41 = vector.multi_reduction <add>, %40, %cst_15 [1] : vector<8x16xf32> to vector<8xf32>
    %42 = vector.shape_cast %41 : vector<8xf32> to vector<8x1xf32>
    %43 = tpu.reciprocal %38 {approx = true} : vector<8x1xf32> -> vector<8x1xf32>
    %44 = arith.mulf %42, %43 : vector<8x1xf32>
    %45 = arith.subf %39, %44 : vector<8x1xf32>
    %c0_16 = arith.constant 0 : index
    %c0_17 = arith.constant 0 : index
    %46 = vector.load %arg3[%c0_16, %c0_17] : memref<8x16xf32, #tpu.memory_space<vmem>>, vector<8x16xf32>
    %47 = arith.addf %46, %31 : vector<8x16xf32>
    %cst_18 = arith.constant dense<0xFF800000> : vector<8xf32>
    %48 = vector.multi_reduction <maximumf>, %47, %cst_18 [1] : vector<8x16xf32> to vector<8xf32>
    %49 = vector.shape_cast %48 : vector<8xf32> to vector<8x1xf32>
    %50 = vector.broadcast %49 : vector<8x1xf32> to vector<8x16xf32>
    %51 = arith.subf %47, %50 : vector<8x16xf32>
    %52 = math.exp %51 : vector<8x16xf32>
    %cst_19 = arith.constant dense<0.000000e+00> : vector<8xf32>
    %53 = vector.multi_reduction <add>, %52, %cst_19 [1] : vector<8x16xf32> to vector<8xf32>
    %54 = vector.shape_cast %53 : vector<8xf32> to vector<8x1xf32>
    %55 = math.log %54 : vector<8x1xf32>
    %56 = arith.addf %49, %55 : vector<8x1xf32>
    %57 = tpu.iota {dimensions = array<i32: 1>} : vector<8x16xi32>
    %58 = vector.broadcast %3 : vector<8x1xi32> to vector<8x16xi32>
    %59 = arith.cmpi eq, %57, %58 : vector<8x16xi32>
    %cst_20 = arith.constant 0.000000e+00 : f32
    %60 = vector.broadcast %cst_20 : f32 to vector<8x16xf32>
    %61 = arith.select %59, %47, %60 : vector<8x16xi1>, vector<8x16xf32>
    %cst_21 = arith.constant dense<0.000000e+00> : vector<8xf32>
    %62 = vector.multi_reduction <add>, %61, %cst_21 [1] : vector<8x16xf32> to vector<8xf32>
    %63 = vector.shape_cast %62 : vector<8xf32> to vector<8x1xf32>
    %64 = arith.subf %56, %63 : vector<8x1xf32>
    %cst_22 = arith.constant 0.000000e+00 : f32
    %65 = vector.broadcast %cst_22 : f32 to vector<8x1xf32>
    %66 = arith.select %11, %64, %65 : vector<8x1xi1>, vector<8x1xf32>
    %cst_23 = arith.constant dense<0.000000e+00> : vector<1xf32>
    %67 = vector.multi_reduction <add>, %66, %cst_23 [0] : vector<8x1xf32> to vector<1xf32>
    %68 = vector.shape_cast %67 : vector<1xf32> to vector<1x1xf32>
    %cst_24 = arith.constant 0.000000e+00 : f32
    %69 = vector.broadcast %cst_24 : f32 to vector<8x1xf32>
    %70 = arith.select %11, %45, %69 : vector<8x1xi1>, vector<8x1xf32>
    %cst_25 = arith.constant dense<0.000000e+00> : vector<1xf32>
    %71 = vector.multi_reduction <add>, %70, %cst_25 [0] : vector<8x1xf32> to vector<1xf32>
    %72 = vector.shape_cast %71 : vector<1xf32> to vector<1x1xf32>
    %c0_26 = arith.constant 0 : index
    %c0_27 = arith.constant 0 : index
    %c0_28 = arith.constant 0 : index
    %73 = vector.load %arg8[%c0_26, %c0_27, %c0_28] : memref<1x1x1xf32, #tpu.memory_space<vmem>>, vector<1x1x1xf32>
    %74 = vector.shape_cast %68 : vector<1x1xf32> to vector<1x1x1xf32>
    %75 = arith.addf %73, %74 : vector<1x1x1xf32>
    %c0_29 = arith.constant 0 : index
    %c0_30 = arith.constant 0 : index
    %c0_31 = arith.constant 0 : index
    %76 = vector.load %arg8[%c0_29, %c0_30, %c0_31] : memref<1x1x1xf32, #tpu.memory_space<vmem>>, vector<1x1x1xf32>
    tpu.vector_store %arg8[%c0_29, %c0_30, %c0_31], %75 {strides = array<i32>} : memref<1x1x1xf32, #tpu.memory_space<vmem>>, vector<1x1x1xf32>,
    %c0_32 = arith.constant 0 : index
    %c0_33 = arith.constant 0 : index
    %c0_34 = arith.constant 0 : index
    %77 = vector.load %arg9[%c0_32, %c0_33, %c0_34] : memref<1x1x1xf32, #tpu.memory_space<vmem>>, vector<1x1x1xf32>
    %78 = vector.shape_cast %72 : vector<1x1xf32> to vector<1x1x1xf32>
    %79 = arith.addf %77, %78 : vector<1x1x1xf32>
    %c0_35 = arith.constant 0 : index
    %c0_36 = arith.constant 0 : index
    %c0_37 = arith.constant 0 : index
    %80 = vector.load %arg9[%c0_35, %c0_36, %c0_37] : memref<1x1x1xf32, #tpu.memory_space<vmem>>, vector<1x1x1xf32>
    tpu.vector_store %arg9[%c0_35, %c0_36, %c0_37], %79 {strides = array<i32>} : memref<1x1x1xf32, #tpu.memory_space<vmem>>, vector<1x1x1xf32>,
    return
  }
  func.func @transform_0(%arg0: i32, %arg1: i32) -> (i32, i32) {
    %c1_i32 = arith.constant 1 : i32
    %0 = arith.muli %arg0, %c1_i32 : i32
    %1 = arith.addi %0, %arg1 : i32
    %c0_i32 = arith.constant 0 : i32
    %c0_i32_0 = arith.constant 0 : i32
    return %1, %c0_i32 : i32, i32
  }
  func.func @transform_1(%arg0: i32, %arg1: i32) -> (i32, i32) {
    %c1_i32 = arith.constant 1 : i32
    %0 = arith.muli %arg0, %c1_i32 : i32
    %1 = arith.addi %0, %arg1 : i32
    %c0_i32 = arith.constant 0 : i32
    %c0_i32_0 = arith.constant 0 : i32
    return %1, %c0_i32 : i32, i32
  }
  func.func @transform_2(%arg0: i32, %arg1: i32) -> (i32, i32) {
    %c1_i32 = arith.constant 1 : i32
    %0 = arith.muli %arg0, %c1_i32 : i32
    %1 = arith.addi %0, %arg1 : i32
    %c0_i32 = arith.constant 0 : i32
    %c0_i32_0 = arith.constant 0 : i32
    return %1, %c0_i32 : i32, i32
  }
  func.func @transform_3(%arg0: i32, %arg1: i32) -> (i32, i32) {
    %c1_i32 = arith.constant 1 : i32
    %0 = arith.muli %arg0, %c1_i32 : i32
    %1 = arith.addi %0, %arg1 : i32
    %c0_i32 = arith.constant 0 : i32
    %c0_i32_0 = arith.constant 0 : i32
    return %1, %c0_i32 : i32, i32
  }
  func.func @transform_4(%arg0: i32, %arg1: i32) -> (i32, i32) {
    %c0_i32 = arith.constant 0 : i32
    %c0_i32_0 = arith.constant 0 : i32
    %c0_i32_1 = arith.constant 0 : i32
    return %c0_i32, %c0_i32_0 : i32, i32
  }
  func.func @transform_5(%arg0: i32, %arg1: i32) -> (i32, i32) {
    %c0_i32 = arith.constant 0 : i32
    %c0_i32_0 = arith.constant 0 : i32
    %c0_i32_1 = arith.constant 0 : i32
    return %c0_i32, %c0_i32_0 : i32, i32
  }
  func.func @transform_6(%arg0: i32, %arg1: i32) -> (i32, i32, i32) {
    %c0_i32 = arith.constant 0 : i32
    %c0_i32_0 = arith.constant 0 : i32
    %c0_i32_1 = arith.constant 0 : i32
    return %arg0, %c0_i32, %c0_i32_0 : i32, i32, i32
  }
  func.func @transform_7(%arg0: i32, %arg1: i32) -> (i32, i32, i32) {
    %c0_i32 = arith.constant 0 : i32
    %c0_i32_0 = arith.constant 0 : i32
    %c0_i32_1 = arith.constant 0 : i32
    return %arg0, %c0_i32, %c0_i32_0 : i32, i32, i32
  }
}

</mosaic_0001>

<llo_original>
// kernel: tpu_custom_call.1
$region0: #{tpu_custom_call.1}
  #allocation0 [shape = 'u32[]', space=smem, size = 0x4, offset = 0x4, fixed_abs, tag = 'smem constant byte address 0x4 - core index']
  #allocation1 [shape = 'u32[144,128]{1,0:T(1,128)}', space=vmem, size = 0x12000, scoped, tag = 'internal scratch']
  #allocation2 [shape = 'f32[1,1]{1,0:T(1,128)S(6)}', space=smem, size = 0x200, scoped, tag = 'scoped memory for tpu_custom_call.1']
  %s0 = inlined_call_operand.vmem [shape: f32[8,32], index: 0, kind: input, shape index: {}]
  %s1 = inlined_call_operand.vmem [shape: f32[8,16], index: 1, kind: input, shape index: {}]
  %s2 = inlined_call_operand.hbm [shape: f32[8,16], index: 2, kind: input, shape index: {}]
  %s3 = inlined_call_operand.vmem [shape: s32[8,1], index: 3, kind: input, shape index: {}]
  %s4 = inlined_call_operand.vmem [shape: f32[1,32], index: 4, kind: input, shape index: {}]
  %s5 = inlined_call_operand.<no memory space> [shape: f32[1,1], index: 5, kind: input, shape index: {}]
  %s6 = inlined_call_operand.hbm [shape: f32[1,1,1], index: 6, kind: output, shape index: {0}]
  %s7 = inlined_call_operand.hbm [shape: f32[1,1,1], index: 7, kind: output, shape index: {1}]
  %8 = xla_tuple %s6, %s7
  %s9 = sld [smem:[#allocation0]]
  $region50: #{tpu_custom_call.1} parent=0
    _
  %s11 = ssub.s32 1, %s9
  %s12 = scalar_select 0, %s11, %s9
  %13 = sst [smem:[#allocation2]] %s5
  $region1: #{tpu_custom_call.1} parent=0
    #allocation3 [shape = 'u8[4096]{0}', space=vmem, size = 0x1000, scoped, tag = 'input window, operand 2, single buffered']
    #allocation4 [shape = 's32[1]{0}', space=sflag, size = 0x4, scoped, tag = 'scoped memory for tpu_custom_call.1']
    #allocation5 [shape = 's32[1]{0}', space=sflag, size = 0x4, scoped, tag = 'scoped memory for tpu_custom_call.1']
    #allocation6 [shape = 'u8[512]{0}', space=vmem, size = 0x400, scoped, tag = 'output window, operand 0, single buffered']
    #allocation7 [shape = 'u8[512]{0}', space=vmem, size = 0x400, scoped, tag = 'output window, operand 1, single buffered']
    #allocation8 [shape = 's32[1]{0}', space=sflag, size = 0x4, scoped, tag = 'scoped memory for tpu_custom_call.1']
    %14 = vsyncpa [#allocation4], 0
    %15 = vsyncpa [#allocation5], 0
    %16 = vsyncpa [#allocation8], 0
    // Predicated region
    $region2: #{tpu_custom_call.1} parent=1 // pred_check
      _
    $region3: #{tpu_custom_call.1} parent=1 // pred_check_branch
      %18 = sbr.rel (0) target = $region5
    $region4: #{tpu_custom_call.1} parent=1 // pred_region
      %s19 = sadd.s32 0, 0
      %p20 = scmp.lt.s32.totalorder %s19, 0
      %s21 = scalar_select %p20, %s19, 0
      %s22 = smul.addr %s21, 8
      %s23 = scalar_lea.vmem %s0, %s22
      %s24 = sadd.s32 0, 0
    $region5: #{tpu_custom_call.1} parent=1 // pred_fallthru
      _
    // Predicated region
    $region6: #{tpu_custom_call.1} parent=1 // pred_check
      _
    $region7: #{tpu_custom_call.1} parent=1 // pred_check_branch
      %26 = sbr.rel (0) target = $region9
    $region8: #{tpu_custom_call.1} parent=1 // pred_region
      %s27 = sadd.s32 0, 0
      %p28 = scmp.lt.s32.totalorder %s27, 0
      %s29 = scalar_select %p28, %s27, 0
      %s30 = smul.addr %s29, 8
      %s31 = scalar_lea.vmem %s1, %s30
      %s32 = sadd.s32 0, 0
    $region9: #{tpu_custom_call.1} parent=1 // pred_fallthru
      _
    // Predicated region
    $region10: #{tpu_custom_call.1} parent=1 // pred_check
      _
    $region11: #{tpu_custom_call.1} parent=1 // pred_check_branch
      %34 = sbr.rel (0) target = $region13
    $region12: #{tpu_custom_call.1} parent=1 // pred_region
      %s35 = sadd.s32 0, 0
      %s37 = ssub.s32 128, 128
      %38 = vsyncadd [#allocation4], %s37
      %s39 = smul.addr %s35, 128
      %s40 = scalar_lea.hbm %s2, %s39
      %s42 = sshll.u32 [#allocation3], 4
      %s43 = int_to_ptr.vmem [resolvable:$true] %s42
      %45 = dma.hbm_to_vmem [thread:$0]  %s40, 128, %s43, [#allocation4]
    $region13: #{tpu_custom_call.1} parent=1 // pred_fallthru
      _
    // Predicated region
    $region14: #{tpu_custom_call.1} parent=1 // pred_check
      _
    $region15: #{tpu_custom_call.1} parent=1 // pred_check_branch
      %47 = sbr.rel (0) target = $region17
    $region16: #{tpu_custom_call.1} parent=1 // pred_region
      %s48 = sadd.s32 0, 0
      %p49 = scmp.lt.s32.totalorder %s48, 0
      %s50 = scalar_select %p49, %s48, 0
      %s51 = smul.addr %s50, 8
      %s52 = scalar_lea.vmem %s3, %s51
      %s53 = sadd.s32 0, 0
    $region17: #{tpu_custom_call.1} parent=1 // pred_fallthru
      _
    // Predicated region
    $region18: #{tpu_custom_call.1} parent=1 // pred_check
      _
    $region19: #{tpu_custom_call.1} parent=1 // pred_check_branch
      %55 = sbr.rel (0) target = $region21
    $region20: #{tpu_custom_call.1} parent=1 // pred_region
      _
    $region21: #{tpu_custom_call.1} parent=1 // pred_fallthru
      _
    // Predicated region
    $region22: #{tpu_custom_call.1} parent=1 // pred_check
      _
    $region23: #{tpu_custom_call.1} parent=1 // pred_check_branch
      %57 = sbr.rel (0) target = $region25
    $region24: #{tpu_custom_call.1} parent=1 // pred_region
      _
    $region25: #{tpu_custom_call.1} parent=1 // pred_fallthru
      _
    // Predicated region
    $region26: #{tpu_custom_call.1} parent=1 // pred_check
      _
    $region27: #{tpu_custom_call.1} parent=1 // pred_check_branch
      %59 = sbr.rel (0) target = $region29
    $region28: #{tpu_custom_call.1} parent=1 // pred_region
      %60 = dma.done [#allocation4], 128
    $region29: #{tpu_custom_call.1} parent=1 // pred_fallthru
      _
    %s61 = sadd.s32 0, 0
    %p62 = scmp.lt.s32.totalorder %s61, 0
    %s63 = scalar_select %p62, %s61, 0
    %s64 = smul.addr %s63, 8
    %s65 = scalar_lea.vmem %s0, %s64
    %s66 = sadd.s32 0, 0
    %p67 = scmp.lt.s32.totalorder %s66, 0
    %s68 = scalar_select %p67, %s66, 0
    %s69 = smul.addr %s68, 8
    %s70 = scalar_lea.vmem %s1, %s69
    %s71 = sadd.s32 0, 0
    %p72 = scmp.lt.s32.totalorder %s71, 0
    %s73 = scalar_select %p72, %s71, 0
    %s74 = smul.addr %s73, 8
    %s75 = scalar_lea.vmem %s3, %s74
    %s76 = sadd.s32 0, 0
    %p77 = scmp.lt.s32.totalorder %s76, 0
    %s78 = scalar_select %p77, %s76, 0
    %s79 = smul.addr %s78, 8
    %s80 = scalar_lea.vmem %s0, %s79
    %s81 = sadd.s32 0, 0
    %s82 = sadd.s32 0, 0
    %p83 = scmp.lt.s32.totalorder %s82, 0
    %s84 = scalar_select %p83, %s82, 0
    %s85 = smul.addr %s84, 8
    %s86 = scalar_lea.vmem %s1, %s85
    %s87 = sadd.s32 0, 0
    %s88 = sadd.s32 0, 0
    %s89 = sadd.s32 0, 0
    %p90 = scmp.lt.s32.totalorder %s89, 0
    %s91 = scalar_select %p90, %s89, 0
    %s92 = smul.addr %s91, 8
    %s93 = scalar_lea.vmem %s3, %s92
    %s94 = sadd.s32 0, 0
    %p95 = scmp.eq.s32.totalorder 0, 0
    // Predicated region
    $region30: #{tpu_custom_call.1} parent=1 // pred_check
      %p96 = pneg %p95
    $region31: #{tpu_custom_call.1} parent=1 // pred_check_branch
      %98 = sbr.rel (%p96) target = $region33
    $region32: #{tpu_custom_call.1} parent=1 // pred_region
      %vm99 = vcmask 0
      %100 = vst.msk [vmem:[#allocation6] sm:$0x1] %vm99, 0.0
      %101 = vst.msk [vmem:[#allocation7] sm:$0x1] %vm99, 0.0
    $region33: #{tpu_custom_call.1} parent=1 // pred_fallthru
      _
    %v102 = vld [vmem:[%s93] sm:$0xff]
    %s103 = sadd.s32 0, 0
    %s104 = smul.u32 %s103, 8
    %v105 = vlaneseq
    %v106 = vshrl.u32 %v105, 7
    %v107 = vstv %s104
    %v108 = vadd.s32 %v107, %v106
    %vm109 = vcmp.lt.s32.totalorder %v108, 8
    %s110 = sld [smem:[#allocation2]]
    %v111 = vld [vmem:[%s80] sm:$0xff]
    %v112 = vld [vmem:[%s4] sm:$0x1]
    %v114 = vlaneseq
    %v115 = vshrl.u32 %v114, 7
    %v116 = vsub.s32 0, %v115
    %v117 = vrot.slane %v112, %v116
    %v119 = vmul.f32 %v111, %v117
    %vm120 = vcmask 261120
    %v121 = vsel %vm120, %v119, 0.0
    %122 = vadd.xlane.f32.xlu0 %v121
    %v123 = vpop.xlane.xlu0 %122
    %v124 = vstv %s110
    %v125 = vadd.f32 %v123, %v124
    %v126 = vmax.f32 %v125, 0.0
    %v127 = vand.u32 2147483647, %v125
    %v128 = vsub.f32 0.0, %v127
    %v129 = vmul.f32 %v128, 1.442695
    %v130 = vpow.pop %v129
    %v131 = vadd.f32 %v130, 1.0
    %v132 = vlog2.pop %v131
    %v133 = vmul.f32 %v132, 0.6931472
    %v134 = vmul.f32 -0.5, %v130
    %v135 = vadd.f32 %v134, 1.0
    %v136 = vmul.f32 %v135, %v130
    %v137 = vand.u32 2147483647, %v130
    %vm138 = vcmp.lt.f32.partialorder %v137, 0.0004427343
    %v139 = vsel %vm138, %v136, %v133
    %v140 = vadd.f32 %v126, %v139
    %v141 = vld [vmem:[#allocation3] sm:$0xff]
    %v142 = vmul.f32 %v141, %v140
    %vm143 = vcmask 130048
    %v144 = vsel %vm143, %v142, -inf
    %145 = vmax.xlane.f32.xlu0 %v144
    %v146 = vpop.xlane.xlu0 %145
    %v147 = vsub.f32 %v142, %v146
    %v148 = vmul.f32 %v147, 1.442695
    %v149 = vpow.pop %v148
    %v150 = vsel %vm143, %v149, 0.0
    %151 = vadd.xlane.f32.xlu0 %v150
    %v152 = vpop.xlane.xlu0 %151
    %v153 = vlog2.pop %v152
    %v154 = vmul.f32 %v153, 0.6931472
    %v155 = vmul.f32 %v149, %v147
    %v156 = vsel %vm143, %v155, 0.0
    %157 = vadd.xlane.f32.xlu0 %v156
    %v158 = vpop.xlane.xlu0 %157
    %v159 = vrcp.pop %v152
    %v160 = vmul.f32 %v158, %v159
    %v161 = vsub.f32 %v154, %v160
    %v162 = vld [vmem:[%s86] sm:$0xff]
    %v163 = vadd.f32 %v162, %v142
    %v164 = vsel %vm143, %v163, -inf
    %165 = vmax.xlane.f32.xlu0 %v164
    %v166 = vpop.xlane.xlu0 %165
    %v167 = vsub.f32 %v163, %v166
    %v168 = vmul.f32 %v167, 1.442695
    %v169 = vpow.pop %v168
    %v170 = vsel %vm143, %v169, 0.0
    %171 = vadd.xlane.f32.xlu0 %v170
    %v172 = vpop.xlane.xlu0 %171
    %v173 = vlog2.pop %v172
    %v174 = vmul.f32 %v173, 0.6931472
    %v175 = vadd.f32 %v166, %v174
    %v176 = vlaneseq
    %v177 = vand.u32 %v176, 127
    %178 = vset.pattern.permute.xlu0 0
    %179 = vperm.xlu0 %178, %v102
    %v180 = vpop.permute.xlu0 %179
    %vm181 = vcmp.eq.s32.totalorder %v177, %v180
    %v182 = vsel %vm181, %v163, 0.0
    %v183 = vsel %vm143, %v182, 0.0
    %184 = vadd.xlane.f32.xlu0 %v183
    %v185 = vpop.xlane.xlu0 %184
    %v186 = vsub.f32 %v175, %v185
    %v187 = vsel %vm109, %v186, 0.0
    %v188 = vrot.slane %v187, 4
    %v189 = vadd.f32 %v187, %v188
    %v190 = vrot.slane %v189, 2
    %v191 = vadd.f32 %v189, %v190
    %v192 = vrot.slane %v191, 1
    %v193 = vadd.f32 %v191, %v192
    %v194 = vsel %vm109, %v161, 0.0
    %v195 = vrot.slane %v194, 4
    %v196 = vadd.f32 %v194, %v195
    %v197 = vrot.slane %v196, 2
    %v198 = vadd.f32 %v196, %v197
    %v199 = vrot.slane %v198, 1
    %v200 = vadd.f32 %v198, %v199
    %v201 = vld [vmem:[#allocation6] sm:$0x1]
    %v202 = vadd.f32 %v201, %v193
    %vm203 = vcmask 0
    %204 = vst.msk [vmem:[#allocation6] sm:$0x1] %vm203, %v202
    %v205 = vld [vmem:[#allocation7] sm:$0x1]
    %v206 = vadd.f32 %v205, %v200
    %207 = vst.msk [vmem:[#allocation7] sm:$0x1] %vm203, %v206
    // Predicated region
    $region34: #{tpu_custom_call.1} parent=1 // pred_check
      _
    $region35: #{tpu_custom_call.1} parent=1 // pred_check_branch
      %209 = sbr.rel (0) target = $region37
    $region36: #{tpu_custom_call.1} parent=1 // pred_region
      %s211 = ssub.s32 16, 16
      %212 = vsyncadd [#allocation5], %s211
      %s214 = sshll.u32 [#allocation6], 4
      %s215 = int_to_ptr.vmem [resolvable:$true] %s214
      %217 = dma.vmem_to_hbm [thread:$0]  %s215, 16, %s6, [#allocation5]
    $region37: #{tpu_custom_call.1} parent=1 // pred_fallthru
      _
    // Predicated region
    $region38: #{tpu_custom_call.1} parent=1 // pred_check
      _
    $region39: #{tpu_custom_call.1} parent=1 // pred_check_branch
      %219 = sbr.rel (0) target = $region41
    $region40: #{tpu_custom_call.1} parent=1 // pred_region
      %s221 = ssub.s32 16, 16
      %222 = vsyncadd [#allocation8], %s221
      %s224 = sshll.u32 [#allocation7], 4
      %s225 = int_to_ptr.vmem [resolvable:$true] %s224
      %227 = dma.vmem_to_hbm [thread:$0]  %s225, 16, %s7, [#allocation8]
    $region41: #{tpu_custom_call.1} parent=1 // pred_fallthru
      _
    // Predicated region
    $region42: #{tpu_custom_call.1} parent=1 // pred_check
      _
    $region43: #{tpu_custom_call.1} parent=1 // pred_check_branch
      %229 = sbr.rel (0) target = $region45
    $region44: #{tpu_custom_call.1} parent=1 // pred_region
      %230 = dma.done [#allocation5], 16
    $region45: #{tpu_custom_call.1} parent=1 // pred_fallthru
      _
    // Predicated region
    $region46: #{tpu_custom_call.1} parent=1 // pred_check
      _
    $region47: #{tpu_custom_call.1} parent=1 // pred_check_branch
      %232 = sbr.rel (0) target = $region49
    $region48: #{tpu_custom_call.1} parent=1 // pred_region
      %233 = dma.done [#allocation8], 16
    $region49: #{tpu_custom_call.1} parent=1 // pred_fallthru
      _
    %234 = vsyncpa [#allocation4], 1
    %235 = vsyncpa [#allocation5], 1
    %236 = vsyncpa [#allocation8], 1

</llo_original>
